<compile_context>
chip_gen: v7x
topology: tpu7x:2x2x1
jax: 0.10.0
libtpu: 0.0.40
codegen_flags: <defaults>
</compile_context>

<pallas_src>
import functools

import jax
import jax.numpy as jnp
from jax.experimental import pallas as pl
from jax.experimental.pallas import tpu as pltpu


def _label_smoothing_kernel(pred_ref, target_ref, out_ref, *, classes, smoothing,
                            total_n, tile_n):
    i = pl.program_id(0)

    confidence = 1.0 - smoothing
    off_value = smoothing / (classes - 1)

    # Upcast to f32 for exp/log (required on v5e: no bf16 VPU/EUP).
    pred = pred_ref[...].astype(jnp.float32)                           # (tn, C)
    tn, c = pred.shape

    # Numerically stable log-softmax pieces.
    m = jnp.max(pred, axis=-1, keepdims=True)                          # (tn, 1)
    shifted = pred - m                                                  # (tn, C)
    lse = jnp.log(jnp.sum(jnp.exp(shifted), axis=-1, keepdims=True))   # (tn, 1)

    # Single fused weighted reduce over the class axis (no true_dist tensor,
    # no second full-C pass): the weights sum to 1 so the lse term is just +lse.
    tgt = target_ref[...]                                               # (tn, 1)
    col = jax.lax.broadcasted_iota(jnp.int32, (tn, c), 1)
    w = jnp.where(col == tgt, confidence, off_value)                    # (tn, C)
    weighted = jnp.sum(shifted * w, axis=-1, keepdims=True)             # (tn, 1)

    per_row = lse - weighted                                            # (tn, 1)

    # Mask padded rows of the last (partial) tile *before* the cross-row sum
    # (padded rows may hold garbage that went through max/exp above).
    row = jax.lax.broadcasted_iota(jnp.int32, (tn, 1), 0) + i * tile_n
    per_row = jnp.where(row < total_n, per_row, 0.0)

    # Per-tile partial sum; the mean happens outside the pallas_call.
    out_ref[0, 0] = jnp.sum(per_row)


def label_smoothing_loss(pred, target, classes, smoothing=0.1, tile_n=None,
                         vmem_budget_bytes=None):
    """pred: (N, C) float (f32/bf16) logits; target: (N,) int labels. Scalar f32."""
    n, c = pred.shape
    assert c == classes
    assert classes > 1, "label smoothing needs at least 2 classes"

    in_bytes = jnp.dtype(pred.dtype).itemsize
    # Sublane packing: f32 tile is (8,128), bf16 (16,128), 8-bit (32,128).
    align = {4: 8, 2: 16, 1: 32}.get(in_bytes, 8)

    # Pick the VMEM budget per generation: ~1/3 of physical VMEM
    # (~40 MiB of the 128 MiB on v5e/v6e, ~21 MiB of the 64 MiB on v7x).
    try:
        vmem_cap = int(pltpu.get_tpu_info().vmem_capacity_bytes)
    except Exception:
        vmem_cap = 64 << 20  # conservative fallback, valid on all generations
    if vmem_budget_bytes is None:
        vmem_budget_bytes = min(40 << 20, max(vmem_cap // 3, 8 << 20))

    # Per-row VMEM cost: double-buffered input block in the *input* dtype plus
    # ~3 f32 (tile_n, C) intermediates (upcast, shifted/exp, weight mask), so
    # bf16 inputs with large C do not silently overshoot and spill.
    per_row_bytes = 2 * c * in_bytes + 3 * c * 4 + 2 * 4
    if tile_n is None:
        max_rows = max(align, vmem_budget_bytes // per_row_bytes)
        tile_n = min(n, max_rows, 4096)
    tile_n = min(tile_n, n)
    if tile_n < n:
        tile_n = max(align, (tile_n // align) * align)
    num_tiles = pl.cdiv(n, tile_n)

    target2d = target.astype(jnp.int32).reshape(n, 1)

    kernel = functools.partial(
        _label_smoothing_kernel, classes=classes, smoothing=float(smoothing),
        total_n=n, tile_n=tile_n)

    cost = pl.CostEstimate(
        flops=6 * n * c,
        transcendentals=n * c + n,
        bytes_accessed=n * c * in_bytes + n * 4 + num_tiles * 4,
    )

    vmem_limit = int(min(max(tile_n * per_row_bytes + (2 << 20), 16 << 20),
                         vmem_cap - (16 << 20)))

    # Only when large C forces tiny row tiles, deepen the input pipeline so the
    # per-step DMA latency stays hidden (neutral when tiles are already large).
    pred_spec = pl.BlockSpec((tile_n, c), lambda i: (i, 0))
    if hasattr(pl, "Buffered") and tile_n <= 64 and num_tiles >= 8:
        try:
            pred_spec = pl.BlockSpec((tile_n, c), lambda i: (i, 0),
                                     pipeline_mode=pl.Buffered(3))
        except TypeError:
            pass  # older jax without pipeline_mode kwarg

    # TODO(synk): for vocab-scale C (LLM logits), add an inner class-axis grid
    # dim with online max/logsumexp + online weighted sum so tile bytes stop
    # scaling with C (most important under v7x's 64 MiB VMEM).
    partials = pl.pallas_call(
        kernel,
        out_shape=jax.ShapeDtypeStruct((num_tiles, 1), jnp.float32),
        grid=(num_tiles,),
        in_specs=[
            pred_spec,
            pl.BlockSpec((tile_n, 1), lambda i: (i, 0)),
        ],
        out_specs=pl.BlockSpec((1, 1), lambda i: (i, 0),
                               memory_space=pltpu.MemorySpace.SMEM),
        compiler_params=pltpu.CompilerParams(
            dimension_semantics=("parallel",),
            vmem_limit_bytes=vmem_limit,
        ),
        cost_estimate=cost,
    )(pred, target2d)

    return jnp.sum(partials[:, 0]) / n


def _ref_loss(p, t, c, smoothing=0.1):
    logp = jax.nn.log_softmax(p.astype(jnp.float32), axis=-1)
    true_dist = jnp.full(p.shape, smoothing / (c - 1), jnp.float32)
    true_dist = true_dist.at[jnp.arange(p.shape[0]), t].set(1.0 - smoothing)
    return jnp.mean(jnp.sum(-true_dist * logp, axis=-1))


if __name__ == "__main__":
    key = jax.random.PRNGKey(0)
    k_pred, k_tgt = jax.random.split(key)

    # Small demo: 24 samples, 128 classes.
    N, C = 24, 128
    pred = jax.random.normal(k_pred, (N, C), dtype=jnp.float32)
    target = jax.random.randint(k_tgt, (N,), 0, C, dtype=jnp.int32)
    ref = _ref_loss(pred, target, C)

    # Auto tile sizing (single block here).
    loss_auto = jax.block_until_ready(
        label_smoothing_loss(pred, target, classes=C, smoothing=0.1))
    assert jnp.allclose(loss_auto, ref, atol=1e-5, rtol=1e-5), (loss_auto, ref)

    # Forced small tiles: exercises the gridded batch axis + per-tile partials.
    loss_tiled = jax.block_until_ready(
        label_smoothing_loss(pred, target, classes=C, smoothing=0.1, tile_n=8))
    assert jnp.allclose(loss_tiled, ref, atol=1e-5, rtol=1e-5), (loss_tiled, ref)

    # Partial last tile (N2 not a multiple of the tile) and bf16 logits
    # (half the HBM traffic; kernel upcasts to f32 and rounds tiles to 16 rows).
    N2 = 20
    pred_bf16 = jax.random.normal(k_pred, (N2, C), dtype=jnp.float32).astype(jnp.bfloat16)
    target2 = jax.random.randint(k_tgt, (N2,), 0, C, dtype=jnp.int32)
    loss_bf16 = jax.block_until_ready(
        label_smoothing_loss(pred_bf16, target2, classes=C, smoothing=0.1, tile_n=8))
    ref_bf16 = _ref_loss(pred_bf16.astype(jnp.float32), target2, C)
    assert jnp.allclose(loss_bf16, ref_bf16, atol=1e-4, rtol=1e-4), (loss_bf16, ref_bf16)

    print("KERNEL_OK")
</pallas_src>

<mosaic_0001>
module attributes {stable_mosaic.version = 11 : i64} {
  func.func @_label_smoothing_kernel(%arg0: i32, %arg1: memref<24x128xf32, #tpu.memory_space<vmem>>, %arg2: memref<24x1xi32, #tpu.memory_space<vmem>>, %arg3: memref<1x1xf32, #tpu.memory_space<smem>>) attributes {dimension_semantics = [#tpu.dimension_semantics<parallel>], iteration_bounds = array<i64: 1>, scalar_prefetch = 0 : i64, scratch_operands = 0 : i64, tpu.core_type = #tpu.core_type<tc>, window_params = [{transform_indices = @transform_0, window_bounds = array<i64: 24, 128>}, {transform_indices = @transform_1, window_bounds = array<i64: 24, 1>}, {transform_indices = @transform_2, window_bounds = array<i64: 1, 1>}]} {
    %c0 = arith.constant 0 : index
    %c0_0 = arith.constant 0 : index
    %0 = vector.load %arg1[%c0, %c0_0] : memref<24x128xf32, #tpu.memory_space<vmem>>, vector<24x128xf32>
    %cst = arith.constant dense<0xFF800000> : vector<24xf32>
    %1 = vector.multi_reduction <maximumf>, %0, %cst [1] : vector<24x128xf32> to vector<24xf32>
    %2 = vector.shape_cast %1 : vector<24xf32> to vector<24x1xf32>
    %3 = vector.broadcast %2 : vector<24x1xf32> to vector<24x128xf32>
    %4 = arith.subf %0, %3 : vector<24x128xf32>
    %5 = math.exp %4 : vector<24x128xf32>
    %cst_1 = arith.constant dense<0.000000e+00> : vector<24xf32>
    %6 = vector.multi_reduction <add>, %5, %cst_1 [1] : vector<24x128xf32> to vector<24xf32>
    %7 = vector.shape_cast %6 : vector<24xf32> to vector<24x1xf32>
    %8 = math.log %7 : vector<24x1xf32>
    %c0_2 = arith.constant 0 : index
    %c0_3 = arith.constant 0 : index
    %9 = vector.load %arg2[%c0_2, %c0_3] : memref<24x1xi32, #tpu.memory_space<vmem>>, vector<24x1xi32>
    %10 = tpu.iota {dimensions = array<i32: 1>} : vector<24x128xi32>
    %11 = vector.broadcast %9 : vector<24x1xi32> to vector<24x128xi32>
    %12 = arith.cmpi eq, %10, %11 : vector<24x128xi32>
    %cst_4 = arith.constant 0.899999976 : f32
    %cst_5 = arith.constant 7.87401571E-4 : f32
    %13 = vector.broadcast %cst_4 : f32 to vector<24x128xf32>
    %14 = vector.broadcast %cst_5 : f32 to vector<24x128xf32>
    %15 = arith.select %12, %13, %14 : vector<24x128xi1>, vector<24x128xf32>
    %16 = arith.mulf %4, %15 : vector<24x128xf32>
    %cst_6 = arith.constant dense<0.000000e+00> : vector<24xf32>
    %17 = vector.multi_reduction <add>, %16, %cst_6 [1] : vector<24x128xf32> to vector<24xf32>
    %18 = vector.shape_cast %17 : vector<24xf32> to vector<24x1xf32>
    %19 = arith.subf %8, %18 : vector<24x1xf32>
    %20 = tpu.iota {dimensions = array<i32: 0>} : vector<24x1xi32>
    %c24_i32 = arith.constant 24 : i32
    %21 = arith.muli %arg0, %c24_i32 : i32
    %22 = vector.broadcast %21 : i32 to vector<24x1xi32>
    %23 = arith.addi %20, %22 : vector<24x1xi32>
    %c24_i32_7 = arith.constant 24 : i32
    %24 = vector.broadcast %c24_i32_7 : i32 to vector<24x1xi32>
    %25 = arith.cmpi slt, %23, %24 : vector<24x1xi32>
    %cst_8 = arith.constant 0.000000e+00 : f32
    %26 = vector.broadcast %cst_8 : f32 to vector<24x1xf32>
    %27 = arith.select %25, %19, %26 : vector<24x1xi1>, vector<24x1xf32>
    %28 = vector.shape_cast %27 : vector<24x1xf32> to vector<1x24x1xf32>
    %cst_9 = arith.constant dense<0.000000e+00> : vector<1xf32>
    %29 = vector.multi_reduction <add>, %28, %cst_9 [1, 2] : vector<1x24x1xf32> to vector<1xf32>
    %30 = vector.shape_cast %29 : vector<1xf32> to vector<1x1x1xf32>
    %31 = vector.extract %30[0, 0, 0] : f32 from vector<1x1x1xf32>
    %c0_10 = arith.constant 0 : index
    %c0_11 = arith.constant 0 : index
    %32 = memref.load %arg3[%c0_10, %c0_11] : memref<1x1xf32, #tpu.memory_space<smem>>
    memref.store %31, %arg3[%c0_10, %c0_11] : memref<1x1xf32, #tpu.memory_space<smem>>
    return
  }
  func.func @transform_0(%arg0: i32) -> (i32, i32) {
    %c0_i32 = arith.constant 0 : i32
    %c0_i32_0 = arith.constant 0 : i32
    return %arg0, %c0_i32 : i32, i32
  }
  func.func @transform_1(%arg0: i32) -> (i32, i32) {
    %c0_i32 = arith.constant 0 : i32
    %c0_i32_0 = arith.constant 0 : i32
    return %arg0, %c0_i32 : i32, i32
  }
  func.func @transform_2(%arg0: i32) -> (i32, i32) {
    %c0_i32 = arith.constant 0 : i32
    %c0_i32_0 = arith.constant 0 : i32
    return %arg0, %c0_i32 : i32, i32
  }
}

</mosaic_0001>

<llo_original>
// kernel: tpu_custom_call.1
$region0: #{tpu_custom_call.1}
  #allocation0 [shape = 'u32[]', space=smem, size = 0x4, offset = 0x4, fixed_abs, tag = 'smem constant byte address 0x4 - core index']
  #allocation1 [shape = 'u32[144,128]{1,0:T(1,128)}', space=vmem, size = 0x12000, scoped, tag = 'internal scratch']
  %s0 = inlined_call_operand.vmem [shape: f32[24,128], index: 0, kind: input, shape index: {}]
  %s1 = inlined_call_operand.vmem [shape: s32[24,1], index: 1, kind: input, shape index: {}]
  %s2 = inlined_call_operand.hbm [shape: f32[1,1], index: 2, kind: output, shape index: {}]
  %s3 = sld [smem:[#allocation0]]
  $region18: #{tpu_custom_call.1} parent=0
    _
  %s5 = ssub.s32 1, %s3
  %s6 = scalar_select 0, %s5, %s3
  $region1: #{tpu_custom_call.1} parent=0
    #allocation2 [shape = 'u8[512]{0}', space=smem, size = 0x200, scoped, tag = 'output window, operand 0, single buffered']
    #allocation3 [shape = 's32[1]{0}', space=sflag, size = 0x4, scoped, tag = 'scoped memory for tpu_custom_call.1']
    %7 = vsyncpa [#allocation3], 0
    // Predicated region
    $region2: #{tpu_custom_call.1} parent=1 // pred_check
      _
    $region3: #{tpu_custom_call.1} parent=1 // pred_check_branch
      %9 = sbr.rel (0) target = $region5
    $region4: #{tpu_custom_call.1} parent=1 // pred_region
      _
    $region5: #{tpu_custom_call.1} parent=1 // pred_fallthru
      _
    // Predicated region
    $region6: #{tpu_custom_call.1} parent=1 // pred_check
      _
    $region7: #{tpu_custom_call.1} parent=1 // pred_check_branch
      %11 = sbr.rel (0) target = $region9
    $region8: #{tpu_custom_call.1} parent=1 // pred_region
      _
    $region9: #{tpu_custom_call.1} parent=1 // pred_fallthru
      _
    %v12 = vld [vmem:[%s0] sm:$0xff]
    %v13 = vld [vmem:[%s0 + $0x8] sm:$0xff]
    %v14 = vld [vmem:[%s0 + $0x10] sm:$0xff]
    %15 = vmax.xlane.f32.xlu0 %v12
    %v16 = vpop.xlane.xlu0 %15
    %17 = vmax.xlane.f32.xlu0 %v13
    %v18 = vpop.xlane.xlu0 %17
    %19 = vmax.xlane.f32.xlu0 %v14
    %v20 = vpop.xlane.xlu0 %19
    %v21 = vsub.f32 %v12, %v16
    %v22 = vsub.f32 %v13, %v18
    %v23 = vsub.f32 %v14, %v20
    %v24 = vmul.f32 %v21, 1.442695
    %v25 = vpow.pop %v24
    %v26 = vmul.f32 %v22, 1.442695
    %v27 = vpow.pop %v26
    %v28 = vmul.f32 %v23, 1.442695
    %v29 = vpow.pop %v28
    %30 = vadd.xlane.f32.xlu0 %v25
    %v31 = vpop.xlane.xlu0 %30
    %32 = vadd.xlane.f32.xlu0 %v27
    %v33 = vpop.xlane.xlu0 %32
    %34 = vadd.xlane.f32.xlu0 %v29
    %v35 = vpop.xlane.xlu0 %34
    %v36 = vlog2.pop %v31
    %v37 = vmul.f32 %v36, 0.6931472
    %v38 = vlog2.pop %v33
    %v39 = vmul.f32 %v38, 0.6931472
    %v40 = vlog2.pop %v35
    %v41 = vmul.f32 %v40, 0.6931472
    %v42 = vld [vmem:[%s1] sm:$0xff]
    %v43 = vld [vmem:[%s1 + $0x8] sm:$0xff]
    %v44 = vld [vmem:[%s1 + $0x10] sm:$0xff]
    %v45 = vlaneseq
    %v46 = vand.u32 %v45, 127
    %47 = vset.pattern.permute.xlu0 0
    %48 = vperm.xlu0 %47, %v42
    %v49 = vpop.permute.xlu0 %48
    %50 = vset.pattern.permute.xlu0 0
    %51 = vperm.xlu0 %50, %v43
    %v52 = vpop.permute.xlu0 %51
    %53 = vset.pattern.permute.xlu0 0
    %54 = vperm.xlu0 %53, %v44
    %v55 = vpop.permute.xlu0 %54
    %vm56 = vcmp.eq.s32.totalorder %v46, %v49
    %vm57 = vcmp.eq.s32.totalorder %v46, %v52
    %vm58 = vcmp.eq.s32.totalorder %v46, %v55
    %v59 = vsel %vm56, 0.9, 0.0007874016
    %v60 = vsel %vm57, 0.9, 0.0007874016
    %v61 = vsel %vm58, 0.9, 0.0007874016
    %v62 = vmul.f32 %v21, %v59
    %v63 = vmul.f32 %v22, %v60
    %v64 = vmul.f32 %v23, %v61
    %65 = vadd.xlane.f32.xlu0 %v62
    %v66 = vpop.xlane.xlu0 %65
    %67 = vadd.xlane.f32.xlu0 %v63
    %v68 = vpop.xlane.xlu0 %67
    %69 = vadd.xlane.f32.xlu0 %v64
    %v70 = vpop.xlane.xlu0 %69
    %v71 = vsub.f32 %v37, %v66
    %v72 = vsub.f32 %v39, %v68
    %v73 = vsub.f32 %v41, %v70
    %v74 = vlaneseq
    %v75 = vshrl.u32 %v74, 7
    %v76 = vadd.s32 %v75, 8
    %v77 = vadd.s32 %v75, 16
    %s78 = smul.u32 0, 24
    %v79 = vstv %s78
    %v80 = vadd.s32 %v75, %v79
    %v81 = vadd.s32 %v76, %v79
    %v82 = vadd.s32 %v77, %v79
    %vm83 = vcmp.lt.s32.totalorder %v80, 24
    %vm84 = vcmp.lt.s32.totalorder %v81, 24
    %vm85 = vcmp.lt.s32.totalorder %v82, 24
    %v86 = vsel %vm83, %v71, 0.0
    %v87 = vsel %vm84, %v72, 0.0
    %v88 = vsel %vm85, %v73, 0.0
    %vm89 = vcmask 7168
    %v90 = vsel %vm89, %v86, 0.0
    %v91 = vsel %vm89, %v87, 0.0
    %v92 = vadd.f32 %v90, %v91
    %v93 = vsel %vm89, %v88, 0.0
    %v94 = vadd.f32 %v92, %v93
    %95 = vadd.xlane.f32.xlu0 %v94
    %v96 = vpop.xlane.xlu0 %95
    %v97 = vrot.slane %v96, 4
    %v98 = vadd.f32 %v96, %v97
    %v99 = vrot.slane %v98, 2
    %v100 = vadd.f32 %v98, %v99
    %v101 = vrot.slane %v100, 1
    %v102 = vadd.f32 %v100, %v101
    %s103 = vtos %v102
    %s104 = scalar_lea.smem [#allocation2], 0
    %105 = sst [smem:[%s104]] %s103
    // Predicated region
    $region10: #{tpu_custom_call.1} parent=1 // pred_check
      _
    $region11: #{tpu_custom_call.1} parent=1 // pred_check_branch
      %107 = sbr.rel (0) target = $region13
    $region12: #{tpu_custom_call.1} parent=1 // pred_region
      %s109 = ssub.s32 16, 16
      %110 = vsyncadd [#allocation3], %s109
      %113 = dma.smem_to_hbm [#allocation2], 16, %s2, [#allocation3]
    $region13: #{tpu_custom_call.1} parent=1 // pred_fallthru
      _
    // Predicated region
    $region14: #{tpu_custom_call.1} parent=1 // pred_check
      _
    $region15: #{tpu_custom_call.1} parent=1 // pred_check_branch
      %115 = sbr.rel (0) target = $region17
    $region16: #{tpu_custom_call.1} parent=1 // pred_region
      %116 = dma.done [#allocation3], 16
    $region17: #{tpu_custom_call.1} parent=1 // pred_fallthru
      _
    %117 = sfence
    %118 = vsyncpa [#allocation3], 1

</llo_original>
